<compile_context>
chip_gen: v6e
topology: v6e:2x2x1
jax: 0.10.0
libtpu: 0.0.40
codegen_flags: <defaults>
</compile_context>

<pallas_src>
import math

import jax
import jax.numpy as jnp
from jax.experimental import pallas as pl
from jax.experimental.pallas import tpu as pltpu


_BLOCK_BUDGET_BYTES = 4 * 1024 * 1024  # per-input-block budget (x2 inputs, x2 buffers)


# ------------------------------ helpers -------------------------------------


def _round_up(x, m):
    return ((x + m - 1) // m) * m


def _vmem_capacity_bytes():
    """Physical VMEM per core; used only to clamp vmem_limit_bytes."""
    try:
        return int(pltpu.get_tpu_info().vmem_capacity_bytes)
    except Exception:
        return 64 * 1024 * 1024  # conservative fallback (v7x per-TensorCore)


def _mosaic_params(dims_sem, in_block_vmem, out_block_vmem, itemsize):
    """CompilerParams with vmem_limit_bytes derived from the real block sizes:
    2 inputs x 2 pipeline buffers + 2 output buffers + in-kernel f32 temporaries."""
    f32_block = (in_block_vmem * 4) // max(itemsize, 1)
    needed = 2 * 2 * in_block_vmem + 2 * out_block_vmem + 4 * f32_block + (2 << 20)
    cap = _vmem_capacity_bytes()
    vmem_limit = int(min(max(needed, 16 << 20), (cap * 7) // 8, 112 << 20))
    return pltpu.CompilerParams(
        dimension_semantics=dims_sem,
        vmem_limit_bytes=vmem_limit,
    )


# ------------------------------ kernels -------------------------------------


def _ce_spatial_kernel(logits_ref, targets_ref, loss_ref):
    # Blocks: (bn, C, TL) inputs -> (bn, 1, TL) per-element loss.
    # Class axis (axis=1) sits on sublanes; spatial on lanes -> lane-dense I/O.
    # All reductions are over the class axis only, so garbage lanes / samples
    # in a partial (OOB) block never contaminate valid outputs.
    x = logits_ref[...].astype(jnp.float32)
    t = targets_ref[...].astype(jnp.float32)
    m = jnp.max(x, axis=1, keepdims=True)
    shifted = x - m
    lse = jnp.log(jnp.sum(jnp.exp(shifted), axis=1, keepdims=True))
    # loss = sum_c -t * (shifted - lse) = sum_c t * (lse - shifted)
    loss_ref[...] = jnp.sum(t * (lse - shifted), axis=1, keepdims=True)


def _ce_rows_kernel(logits_ref, targets_ref, loss_ref):
    # 2-D (M, C) path: classes already on the lane axis. Tiles: (tm, C) -> (tm, 1).
    x = logits_ref[...].astype(jnp.float32)
    t = targets_ref[...].astype(jnp.float32)
    m = jnp.max(x, axis=-1, keepdims=True)
    shifted = x - m
    lse = jnp.log(jnp.sum(jnp.exp(shifted), axis=-1, keepdims=True))
    loss_ref[...] = jnp.sum(t * (lse - shifted), axis=-1, keepdims=True)


# ------------------------------ wrappers ------------------------------------


def _ce_spatial(logits_3d, targets_3d, budget):
    """logits/targets: (N, C, S) with the spatial axis last (on lanes).
    Returns per-element loss of shape (N, S), float32.  No pad, no transpose."""
    N, C, S = logits_3d.shape
    itemsize = jnp.dtype(logits_3d.dtype).itemsize
    c_pad = _round_up(C, 8)        # sublane padding of the class axis in VMEM
    s_pad = _round_up(S, 128)      # lane padding of the spatial axis in VMEM
    slab_bytes = c_pad * s_pad * itemsize   # one sample's VMEM footprint

    if slab_bytes <= budget:
        # -- Regime A: small per-sample slab -> pack batch samples per block.
        #    Full-extent (C, S) last dims are exempt from the (8,128) rule.
        bn = max(1, min(N, budget // slab_bytes))
        if N >= 2:                 # keep >= 2 grid steps so megacore can shard
            bn = min(bn, pl.cdiv(N, 2))
        grid = (pl.cdiv(N, bn),)
        in_block, out_block = (bn, C, S), (bn, 1, S)
        in_map = out_map = lambda i: (i, 0, 0)
        dims_sem = ("parallel",)
        in_vmem, out_vmem = bn * slab_bytes, bn * 8 * s_pad * 4
    else:
        # -- Regime B: tile the spatial axis with balanced, 128-aligned tiles.
        cap_tl = max(128, ((budget // (c_pad * itemsize)) // 128) * 128)
        n_tiles = pl.cdiv(S, cap_tl)
        tl = _round_up(pl.cdiv(S, n_tiles), 128)
        if tl >= S:                # degenerate single tile: use the full dim
            tl = S
        grid = (N, pl.cdiv(S, tl))
        in_block, out_block = (1, C, tl), (1, 1, tl)
        in_map = out_map = lambda n, s: (n, 0, s)
        dims_sem = ("parallel", "parallel")
        tl_pad = _round_up(tl, 128)
        in_vmem, out_vmem = c_pad * tl_pad * itemsize, 8 * tl_pad * 4
        # TODO(synk): for C so large that even a 128-lane tile exceeds VMEM,
        # add a tiled-C grid axis (marked "arbitrary") with online-LSE scratch.

    out = pl.pallas_call(
        _ce_spatial_kernel,
        out_shape=jax.ShapeDtypeStruct((N, 1, S), jnp.float32),
        grid_spec=pltpu.PrefetchScalarGridSpec(
            num_scalar_prefetch=0,
            grid=grid,
            in_specs=[pl.BlockSpec(in_block, in_map),
                      pl.BlockSpec(in_block, in_map)],
            out_specs=pl.BlockSpec(out_block, out_map),
        ),
        compiler_params=_mosaic_params(dims_sem, in_vmem, out_vmem, itemsize),
    )(logits_3d, targets_3d)
    return out[:, 0, :]


def _ce_rows(logits_2d, targets_2d, budget):
    """(M, C) inputs, classes on the lane axis.  Returns (M,) float32 loss."""
    M, C = logits_2d.shape
    itemsize = jnp.dtype(logits_2d.dtype).itemsize
    c_lane = _round_up(C, 128)
    cap_tm = max(8, ((budget // (c_lane * itemsize)) // 8) * 8)
    n_tiles = pl.cdiv(M, cap_tm)
    tm = _round_up(pl.cdiv(M, n_tiles), 8)
    if tm >= M:                    # full-dim block (legal for any M)
        tm = M
    grid = (pl.cdiv(M, tm),)
    tm_pad = _round_up(tm, 8)
    params = _mosaic_params(("parallel",), tm_pad * c_lane * itemsize,
                            tm_pad * 128 * 4, itemsize)
    # TODO(synk): for tiny C the (tm, 1) output forces masked vst.msk stores
    # (~1/(2C) of traffic); a lane-dense (tiles, tm) output slab would shave
    # ~10-30% on this secondary 2-D path.
    loss = pl.pallas_call(
        _ce_rows_kernel,
        out_shape=jax.ShapeDtypeStruct((M, 1), jnp.float32),
        grid_spec=pltpu.PrefetchScalarGridSpec(
            num_scalar_prefetch=0,
            grid=grid,
            in_specs=[pl.BlockSpec((tm, C), lambda i: (i, 0)),
                      pl.BlockSpec((tm, C), lambda i: (i, 0))],
            out_specs=pl.BlockSpec((tm, 1), lambda i: (i, 0)),
        ),
        compiler_params=params,
    )(logits_2d, targets_2d)
    return loss[:, 0]


def cross_entropy_w_logits(logits, targets, reduction="mean",
                           block_budget_bytes=_BLOCK_BUDGET_BYTES):
    """Matches CrossEntropyWLogits.forward (log_softmax over dim 1).

    logits, targets: (N, C, *spatial) or (N, C); soft targets.
    reduction='none' -> (N, *spatial) or (N,)
    reduction='mean' -> (*spatial,)   or scalar  (mean over dim 0 only, torch semantics)
    """
    assert reduction in ("mean", "none")
    assert logits.shape == targets.shape and logits.ndim >= 2

    if logits.ndim == 2:
        loss = _ce_rows(logits, targets, block_budget_bytes)             # (N,)
    else:
        N, C = logits.shape[:2]
        spatial = logits.shape[2:]
        S = math.prod(spatial)
        # zero-copy reshape, NO transpose: spatial stays on the lane axis.
        loss = _ce_spatial(logits.reshape(N, C, S),
                           targets.reshape(N, C, S),
                           block_budget_bytes)                           # (N, S)
        loss = loss.reshape((N,) + spatial)

    if reduction == "mean":
        # TODO(synk): for small C the batch-mean could be fused into the kernel
        # (output BlockSpec ignoring n, N axis "arbitrary", masked accumulate)
        # to skip this second HBM pass over the (N, *spatial) loss.
        return jnp.mean(loss, axis=0)
    return loss


# ------------------------------ self-test -----------------------------------


def _ref(logits, targets, reduction):
    logits = logits.astype(jnp.float32)
    targets = targets.astype(jnp.float32)
    log_preds = jax.nn.log_softmax(logits, axis=1)
    loss = jnp.sum(-targets * log_preds, axis=1)
    return jnp.mean(loss, axis=0) if reduction == "mean" else loss


if __name__ == "__main__":
    key = jax.random.PRNGKey(0)
    keys = jax.random.split(key, 10)
    ok = True

    def check(lg, tg, reduction, **kw):
        got = jax.block_until_ready(cross_entropy_w_logits(lg, tg, reduction, **kw))
        want = _ref(lg, tg, reduction)
        return got.shape == want.shape and bool(
            jnp.allclose(got, want, atol=1e-5, rtol=1e-5))

    # main spec case: NCHW = (2, 4, 16, 16) — regime A (batch-packed blocks)
    N, C, H, W = 2, 4, 16, 16
    logits = jax.random.normal(keys[0], (N, C, H, W), jnp.float32)
    targets = jax.nn.softmax(
        jax.random.normal(keys[1], (N, C, H, W), jnp.float32), axis=1)
    out_none = jax.block_until_ready(cross_entropy_w_logits(logits, targets, "none"))
    out_mean = jax.block_until_ready(cross_entropy_w_logits(logits, targets, "mean"))
    ok &= out_none.shape == (N, H, W) and out_mean.shape == (H, W)
    ok &= bool(jnp.allclose(out_none, _ref(logits, targets, "none"), atol=1e-5, rtol=1e-5))
    ok &= bool(jnp.allclose(out_mean, _ref(logits, targets, "mean"), atol=1e-5, rtol=1e-5))

    # non-128-aligned spatial + partial batch block: (3, 4, 5, 7)
    l2 = jax.random.normal(keys[2], (3, 4, 5, 7), jnp.float32)
    t2 = jax.nn.softmax(jax.random.normal(keys[3], (3, 4, 5, 7), jnp.float32), axis=1)
    ok &= check(l2, t2, "none")

    # regime B with a partial lane tile (tiny forced block budget): (2, 4, 45, 41)
    l3 = jax.random.normal(keys[4], (2, 4, 45, 41), jnp.float32)
    t3 = jax.nn.softmax(jax.random.normal(keys[5], (2, 4, 45, 41), jnp.float32), axis=1)
    ok &= check(l3, t3, "none", block_budget_bytes=8 * 1024)
    ok &= check(l3, t3, "mean", block_budget_bytes=8 * 1024)

    # bf16 inputs read without wrapper upcast (f32 compute happens in-kernel)
    l4 = jax.random.normal(keys[6], (2, 4, 16, 16), jnp.float32).astype(jnp.bfloat16)
    t4 = jax.nn.softmax(
        jax.random.normal(keys[7], (2, 4, 16, 16), jnp.float32), axis=1
    ).astype(jnp.bfloat16)
    ok &= check(l4, t4, "none")

    # 2-D (N, C) path, no padding, partial/full-dim block: (6, 4)
    l5 = jax.random.normal(keys[8], (6, 4), jnp.float32)
    t5 = jax.nn.softmax(jax.random.normal(keys[9], (6, 4), jnp.float32), axis=1)
    ok &= check(l5, t5, "none")
    ok &= check(l5, t5, "mean")

    assert ok, "mismatch vs. pure-JAX reference"
    print("KERNEL_OK")
</pallas_src>

<mosaic_0001>
module attributes {stable_mosaic.version = 11 : i64} {
  func.func @_ce_spatial_kernel(%arg0: i32, %arg1: memref<1x4x256xf32, #tpu.memory_space<vmem>>, %arg2: memref<1x4x256xf32, #tpu.memory_space<vmem>>, %arg3: memref<1x1x256xf32, #tpu.memory_space<vmem>>) attributes {dimension_semantics = [#tpu.dimension_semantics<parallel>], iteration_bounds = array<i64: 2>, scalar_prefetch = 0 : i64, scratch_operands = 0 : i64, tpu.core_type = #tpu.core_type<tc>, window_params = [{transform_indices = @transform_0, window_bounds = array<i64: 1, 4, 256>}, {transform_indices = @transform_1, window_bounds = array<i64: 1, 4, 256>}, {transform_indices = @transform_2, window_bounds = array<i64: 1, 1, 256>}]} {
    %c0 = arith.constant 0 : index
    %c0_0 = arith.constant 0 : index
    %c0_1 = arith.constant 0 : index
    %0 = vector.load %arg1[%c0, %c0_0, %c0_1] : memref<1x4x256xf32, #tpu.memory_space<vmem>>, vector<1x4x256xf32>
    %c0_2 = arith.constant 0 : index
    %c0_3 = arith.constant 0 : index
    %c0_4 = arith.constant 0 : index
    %1 = vector.load %arg2[%c0_2, %c0_3, %c0_4] : memref<1x4x256xf32, #tpu.memory_space<vmem>>, vector<1x4x256xf32>
    %cst = arith.constant dense<0xFF800000> : vector<1x256xf32>
    %2 = vector.multi_reduction <maximumf>, %0, %cst [1] : vector<1x4x256xf32> to vector<1x256xf32>
    %3 = vector.shape_cast %2 : vector<1x256xf32> to vector<1x1x256xf32>
    %4 = vector.broadcast %3 : vector<1x1x256xf32> to vector<1x4x256xf32>
    %5 = arith.subf %0, %4 : vector<1x4x256xf32>
    %6 = math.exp %5 : vector<1x4x256xf32>
    %cst_5 = arith.constant dense<0.000000e+00> : vector<1x256xf32>
    %7 = vector.multi_reduction <add>, %6, %cst_5 [1] : vector<1x4x256xf32> to vector<1x256xf32>
    %8 = vector.shape_cast %7 : vector<1x256xf32> to vector<1x1x256xf32>
    %9 = math.log %8 : vector<1x1x256xf32>
    %10 = vector.broadcast %9 : vector<1x1x256xf32> to vector<1x4x256xf32>
    %11 = arith.subf %10, %5 : vector<1x4x256xf32>
    %12 = arith.mulf %1, %11 : vector<1x4x256xf32>
    %cst_6 = arith.constant dense<0.000000e+00> : vector<1x256xf32>
    %13 = vector.multi_reduction <add>, %12, %cst_6 [1] : vector<1x4x256xf32> to vector<1x256xf32>
    %14 = vector.shape_cast %13 : vector<1x256xf32> to vector<1x1x256xf32>
    %c0_7 = arith.constant 0 : index
    %c0_8 = arith.constant 0 : index
    %c0_9 = arith.constant 0 : index
    %15 = vector.load %arg3[%c0_7, %c0_8, %c0_9] : memref<1x1x256xf32, #tpu.memory_space<vmem>>, vector<1x1x256xf32>
    tpu.vector_store %arg3[%c0_7, %c0_8, %c0_9], %14 {strides = array<i32>} : memref<1x1x256xf32, #tpu.memory_space<vmem>>, vector<1x1x256xf32>,
    return
  }
  func.func @transform_0(%arg0: i32) -> (i32, i32, i32) {
    %c0_i32 = arith.constant 0 : i32
    %c0_i32_0 = arith.constant 0 : i32
    %c0_i32_1 = arith.constant 0 : i32
    return %arg0, %c0_i32, %c0_i32_0 : i32, i32, i32
  }
  func.func @transform_1(%arg0: i32) -> (i32, i32, i32) {
    %c0_i32 = arith.constant 0 : i32
    %c0_i32_0 = arith.constant 0 : i32
    %c0_i32_1 = arith.constant 0 : i32
    return %arg0, %c0_i32, %c0_i32_0 : i32, i32, i32
  }
  func.func @transform_2(%arg0: i32) -> (i32, i32, i32) {
    %c0_i32 = arith.constant 0 : i32
    %c0_i32_0 = arith.constant 0 : i32
    %c0_i32_1 = arith.constant 0 : i32
    return %arg0, %c0_i32, %c0_i32_0 : i32, i32, i32
  }
}

</mosaic_0001>

<llo_original>
// kernel: tpu_custom_call.1
$region0: #{tpu_custom_call.1}
  #allocation0 [shape = 'u32[]', space=smem, size = 0x4, offset = 0x4, fixed_abs, tag = 'smem constant byte address 0x4 - core index']
  #allocation1 [shape = 'u32[144,128]{1,0:T(1,128)}', space=vmem, size = 0x12000, scoped, tag = 'internal scratch']
  %s0 = inlined_call_operand.hbm [shape: f32[2,4,256], index: 0, kind: input, shape index: {}]
  %s1 = inlined_call_operand.hbm [shape: f32[2,4,256], index: 1, kind: input, shape index: {}]
  %s2 = inlined_call_operand.hbm [shape: f32[2,1,256], index: 2, kind: output, shape index: {}]
  %s3 = sld [smem:[#allocation0]]
  $region49: #{tpu_custom_call.1} parent=0
    _
  %s5 = ssub.s32 1, %s3
  %s6 = scalar_select 0, %s5, %s3
  $region1: #{tpu_custom_call.1} parent=0
    #allocation2 [shape = 'u8[8192]{0}', space=vmem, size = 0x2000, scoped, tag = 'input window, operand 0']
    #allocation3 [shape = 's32[2]{0}', space=sflag, size = 0x8, scoped, tag = 'scoped memory for tpu_custom_call.1']
    #allocation4 [shape = 's32[2]{0}', space=sflag, size = 0x8, scoped, tag = 'scoped memory for tpu_custom_call.1']
    #allocation5 [shape = 'u8[8192]{0}', space=vmem, size = 0x2000, scoped, tag = 'input window, operand 1']
    #allocation6 [shape = 's32[2]{0}', space=sflag, size = 0x8, scoped, tag = 'scoped memory for tpu_custom_call.1']
    #allocation7 [shape = 'u8[2048]{0}', space=vmem, size = 0x800, scoped, tag = 'output window, operand 0']
    %7 = vsyncpa [#allocation3], 0
    %s8 = scalar_lea.sflag [#allocation3], 1
    %9 = vsyncpa %s8, 0
    %10 = vsyncpa [#allocation6], 0
    %s11 = scalar_lea.sflag [#allocation6], 1
    %12 = vsyncpa %s11, 0
    %13 = vsyncpa [#allocation4], 0
    %s14 = scalar_lea.sflag [#allocation4], 1
    %15 = vsyncpa %s14, 0
    loop: start=0, step=1, limit=4
    $region2: #{tpu_custom_call.1} parent=1 // loop_pre_header
      _
    $region3: #{tpu_custom_call.1} parent=1 // loop_header
      %s17 = sphi 0, %s21
      %p18 = scmp.ge.s32.totalorder %s17, 4
      %s27 = sphi 0, %s29
      %s30 = sphi 0, %s27
      %s31 = sphi 0, %s30
      %s47 = sphi 0, %s31
      %s53 = sphi 0, %s55
      %s56 = sphi 0, %s53
      %s57 = sphi 0, %s56
      %s73 = sphi 0, %s57
      %s79 = sphi 0, %s81
      %s82 = sphi 0, %s79
      %s83 = sphi 0, %s82
      %s99 = sphi 0, %s83
    $region4: #{tpu_custom_call.1} parent=1 // loop_header_branch
      %20 = sbr.rel (%p18) target = $region8
    $region5: #{tpu_custom_call.1} parent=1 // loop_body
      %s22 = ssub.s32 %s17, 1
      %s23 = ssub.s32 %s17, 2
      %s24 = sadd.s32 %s17, 1
      %s25 = ssub.s32 %s17, %s24
      %p26 = scmp.eq.s32.totalorder %s25, 0
      %s28 = sadd.s32 %s27, 1
      %s29 = scalar_select %p26, %s27, %s28
      %p32 = pneg %p26
      %p33 = scmp.eq.s32.totalorder %s17, 1
      %p34 = por %p32, %p33
      %p35 = scmp.ne.s32.totalorder %s27, %s30
      %p36 = scmp.eq.s32.totalorder %s17, 0
      %p37 = por %p35, %p36
      %p38 = scmp.ne.s32.totalorder %s27, %s30
      %p39 = scmp.eq.s32.totalorder %s22, 1
      %p40 = por %p38, %p39
      %p41 = scmp.ne.s32.totalorder %s30, %s31
      %p42 = scmp.eq.s32.totalorder %s22, 0
      %p43 = por %p41, %p42
      %p44 = scmp.ne.s32.totalorder %s30, %s31
      %p45 = scmp.eq.s32.totalorder %s23, 1
      %p46 = por %p44, %p45
      %p48 = scmp.ne.s32.totalorder %s31, %s47
      %p49 = scmp.eq.s32.totalorder %s23, 0
      %p50 = por %p48, %p49
      %s51 = ssub.s32 %s17, %s24
      %p52 = scmp.eq.s32.totalorder %s51, 0
      %s54 = sadd.s32 %s53, 1
      %s55 = scalar_select %p52, %s53, %s54
      %p58 = pneg %p52
      %p59 = scmp.eq.s32.totalorder %s17, 1
      %p60 = por %p58, %p59
      %p61 = scmp.ne.s32.totalorder %s53, %s56
      %p62 = scmp.eq.s32.totalorder %s17, 0
      %p63 = por %p61, %p62
      %p64 = scmp.ne.s32.totalorder %s53, %s56
      %p65 = scmp.eq.s32.totalorder %s22, 1
      %p66 = por %p64, %p65
      %p67 = scmp.ne.s32.totalorder %s56, %s57
      %p68 = scmp.eq.s32.totalorder %s22, 0
      %p69 = por %p67, %p68
      %p70 = scmp.ne.s32.totalorder %s56, %s57
      %p71 = scmp.eq.s32.totalorder %s23, 1
      %p72 = por %p70, %p71
      %p74 = scmp.ne.s32.totalorder %s57, %s73
      %p75 = scmp.eq.s32.totalorder %s23, 0
      %p76 = por %p74, %p75
      %s77 = ssub.s32 %s17, %s24
      %p78 = scmp.eq.s32.totalorder %s77, 0
      %s80 = sadd.s32 %s79, 1
      %s81 = scalar_select %p78, %s79, %s80
      %p84 = pneg %p78
      %p85 = scmp.eq.s32.totalorder %s17, 1
      %p86 = por %p84, %p85
      %p87 = scmp.ne.s32.totalorder %s79, %s82
      %p88 = scmp.eq.s32.totalorder %s17, 0
      %p89 = por %p87, %p88
      %p90 = scmp.ne.s32.totalorder %s79, %s82
      %p91 = scmp.eq.s32.totalorder %s22, 1
      %p92 = por %p90, %p91
      %p93 = scmp.ne.s32.totalorder %s82, %s83
      %p94 = scmp.eq.s32.totalorder %s22, 0
      %p95 = por %p93, %p94
      %p96 = scmp.ne.s32.totalorder %s82, %s83
      %p97 = scmp.eq.s32.totalorder %s23, 1
      %p98 = por %p96, %p97
      %p100 = scmp.ne.s32.totalorder %s83, %s99
      %p101 = scmp.eq.s32.totalorder %s23, 0
      %p102 = por %p100, %p101
      %p103 = scmp.le.s32.totalorder 1, %s17
      %p104 = scmp.lt.s32.totalorder %s17, 3
      %p105 = pnand %p103, %p104
      %p106 = pneg %p105
      // Predicated region
      $region9: #{tpu_custom_call.1} parent=5 // pred_check
        _
      $region10: #{tpu_custom_call.1} parent=5 // pred_check_branch
        %108 = sbr.rel (%p105) target = $region12
      $region11: #{tpu_custom_call.1} parent=5 // pred_region
        %s109 = ssub.s32 %s17, 1
      $region12: #{tpu_custom_call.1} parent=5 // pred_fallthru
        _
      %p110 = scmp.lt.s32.totalorder %s17, 2
      // Predicated region
      $region13: #{tpu_custom_call.1} parent=5 // pred_check
        %p111 = pneg %p110
      $region14: #{tpu_custom_call.1} parent=5 // pred_check_branch
        %113 = sbr.rel (%p111) target = $region16
      $region15: #{tpu_custom_call.1} parent=5 // pred_region
        // Predicated region
        $region17: #{tpu_custom_call.1} parent=15 // pred_check
          %p114 = pneg %p37
        $region18: #{tpu_custom_call.1} parent=15 // pred_check_branch
          %116 = sbr.rel (%p114) target = $region20
        $region19: #{tpu_custom_call.1} parent=15 // pred_region
          %s117 = sand.u32 %s27, 1
          %s118 = scalar_lea.sflag [#allocation3], %s117
          %s119 = sand.u32 %s27, 1
          %s120 = smul.addr %s119, 8
          %s121 = scalar_lea.vmem [#allocation2], %s120
          %s123 = ssub.s32 128, 128
          %124 = vsyncadd %s118, %s123
          %s125 = smul.addr %s17, 2
          %s126 = smul.addr %s125, 64
          %s127 = scalar_lea.hbm %s0, %s126
          %s129 = sshll.u32 %s121, 4
          %s130 = int_to_ptr.vmem [resolvable:$true] %s129
          %132 = dma.hbm_to_vmem [thread:$0]  %s127, 128, %s130, %s118
        $region20: #{tpu_custom_call.1} parent=15 // pred_fallthru
          _
        // Predicated region
        $region21: #{tpu_custom_call.1} parent=15 // pred_check
          %p133 = pneg %p63
        $region22: #{tpu_custom_call.1} parent=15 // pred_check_branch
          %135 = sbr.rel (%p133) target = $region24
        $region23: #{tpu_custom_call.1} parent=15 // pred_region
          %s136 = sand.u32 %s53, 1
          %s137 = scalar_lea.sflag [#allocation6], %s136
          %s138 = sand.u32 %s53, 1
          %s139 = smul.addr %s138, 8
          %s140 = scalar_lea.vmem [#allocation5], %s139
          %s142 = ssub.s32 128, 128
          %143 = vsyncadd %s137, %s142
          %s144 = smul.addr %s17, 2
          %s145 = smul.addr %s144, 64
          %s146 = scalar_lea.hbm %s1, %s145
          %s148 = sshll.u32 %s140, 4
          %s149 = int_to_ptr.vmem [resolvable:$true] %s148
          %151 = dma.hbm_to_vmem [thread:$0]  %s146, 128, %s149, %s137
        $region24: #{tpu_custom_call.1} parent=15 // pred_fallthru
          _
      $region16: #{tpu_custom_call.1} parent=5 // pred_fallthru
        _
      %p152 = scmp.le.s32.totalorder 1, %s17
      %p153 = scmp.lt.s32.totalorder %s17, 3
      %p154 = pnand %p152, %p153
      %p155 = pneg %p154
      // Predicated region
      $region25: #{tpu_custom_call.1} parent=5 // pred_check
        _
      $region26: #{tpu_custom_call.1} parent=5 // pred_check_branch
        %157 = sbr.rel (%p154) target = $region28
      $region27: #{tpu_custom_call.1} parent=5 // pred_region
        %s158 = ssub.s32 %s17, 1
        %s159 = sand.u32 %s30, 1
        %s160 = scalar_lea.sflag [#allocation3], %s159
        %s161 = sand.u32 %s30, 1
        %s162 = smul.addr %s161, 8
        %s163 = scalar_lea.vmem [#allocation2], %s162
        // Predicated region
        $region29: #{tpu_custom_call.1} parent=27 // pred_check
          %p164 = pneg %p43
        $region30: #{tpu_custom_call.1} parent=27 // pred_check_branch
          %166 = sbr.rel (%p164) target = $region32
        $region31: #{tpu_custom_call.1} parent=27 // pred_region
          %167 = dma.done %s160, 128
        $region32: #{tpu_custom_call.1} parent=27 // pred_fallthru
          _
        %s168 = sand.u32 %s56, 1
        %s169 = scalar_lea.sflag [#allocation6], %s168
        %s170 = sand.u32 %s56, 1
        %s171 = smul.addr %s170, 8
        %s172 = scalar_lea.vmem [#allocation5], %s171
        // Predicated region
        $region33: #{tpu_custom_call.1} parent=27 // pred_check
          %p173 = pneg %p69
        $region34: #{tpu_custom_call.1} parent=27 // pred_check_branch
          %175 = sbr.rel (%p173) target = $region36
        $region35: #{tpu_custom_call.1} parent=27 // pred_region
          %176 = dma.done %s169, 128
        $region36: #{tpu_custom_call.1} parent=27 // pred_fallthru
          _
        %s177 = sand.u32 %s30, 1
        %s178 = scalar_lea.sflag [#allocation3], %s177
        %s179 = sand.u32 %s30, 1
        %s180 = smul.addr %s179, 8
        %s181 = scalar_lea.vmem [#allocation2], %s180
        %p182 = pneg %p43
        %p183 = pneg %p40
        %s184 = sand.u32 %s56, 1
        %s185 = scalar_lea.sflag [#allocation6], %s184
        %s186 = sand.u32 %s56, 1
        %s187 = smul.addr %s186, 8
        %s188 = scalar_lea.vmem [#allocation5], %s187
        %p189 = pneg %p69
        %p190 = pneg %p66
        %p191 = pneg %p95
        %p192 = pneg %p92
        %s193 = sand.u32 %s82, 1
        %s194 = scalar_lea.sflag [#allocation4], %s193
        %s195 = sand.u32 %s82, 1
        %s196 = smul.addr %s195, 2
        %s197 = scalar_lea.vmem [#allocation7], %s196
        %v198 = vld [vmem:[%s163] sm:$0xff]
        %v199 = vld [vmem:[%s172] sm:$0xff]
        %v201 = vcombine.high %v198, %v198
        %vm203 = vcmask 1043456
        %v204 = vsel %vm203, %v198, -inf
        %v205 = vrot.slane %v204, 4
        %v206 = vmax.f32 %v204, %v205
        %v207 = vrot.slane %v206, 2
        %v208 = vmax.f32 %v206, %v207
        %v209 = vrot.slane %v208, 1
        %v210 = vmax.f32 %v208, %v209
        %v211 = vsel %vm203, %v201, -inf
        %v212 = vrot.slane %v211, 4
        %v213 = vmax.f32 %v211, %v212
        %v214 = vrot.slane %v213, 2
        %v215 = vmax.f32 %v213, %v214
        %v216 = vrot.slane %v215, 1
        %v217 = vmax.f32 %v215, %v216
        %v220 = vcombine.low %v210, %v217
        %v222 = vsub.f32 %v198, %v220
        %v223 = vmul.f32 %v222, 1.442695
        %v224 = vpow.pop %v223
        %v226 = vcombine.high %v224, %v224
        %v228 = vsel %vm203, %v224, 0.0
        %v229 = vrot.slane %v228, 4
        %v230 = vadd.f32 %v228, %v229
        %v231 = vrot.slane %v230, 2
        %v232 = vadd.f32 %v230, %v231
        %v233 = vrot.slane %v232, 1
        %v234 = vadd.f32 %v232, %v233
        %v235 = vsel %vm203, %v226, 0.0
        %v236 = vrot.slane %v235, 4
        %v237 = vadd.f32 %v235, %v236
        %v238 = vrot.slane %v237, 2
        %v239 = vadd.f32 %v237, %v238
        %v240 = vrot.slane %v239, 1
        %v241 = vadd.f32 %v239, %v240
        %v242 = vlog2.pop %v234
        %v243 = vmul.f32 %v242, 0.6931472
        %v244 = vlog2.pop %v241
        %v245 = vmul.f32 %v244, 0.6931472
        %v247 = vcombine.high %v222, %v222
        %v249 = vsub.f32 %v243, %v222
        %v250 = vsub.f32 %v245, %v247
        %v253 = vcombine.low %v249, %v250
        %v255 = vmul.f32 %v199, %v253
        %v257 = vcombine.high %v255, %v255
        %v259 = vsel %vm203, %v255, 0.0
        %v260 = vrot.slane %v259, 4
        %v261 = vadd.f32 %v259, %v260
        %v262 = vrot.slane %v261, 2
        %v263 = vadd.f32 %v261, %v262
        %v264 = vrot.slane %v263, 1
        %v265 = vadd.f32 %v263, %v264
        %v266 = vsel %vm203, %v257, 0.0
        %v267 = vrot.slane %v266, 4
        %v268 = vadd.f32 %v266, %v267
        %v269 = vrot.slane %v268, 2
        %v270 = vadd.f32 %v268, %v269
        %v271 = vrot.slane %v270, 1
        %v272 = vadd.f32 %v270, %v271
        %v275 = vcombine.low %v265, %v272
        %v277 = vunpack.c.l.s4 1966171168
        %v278 = vunpack.c.0.s8 %v277
        %v279 = vlaneseq
        %v280 = vshrl.u32 %v279, 7
        %v281 = vsub.s32 %v278, %v280
        %v282 = vrot.slane %v275, %v281
        %v284 = vunpack.c.l.s4 1966171168
        %v285 = vunpack.c.0.s8 %v284
        %v286 = vlaneseq
        %v287 = vshrl.u32 %v286, 7
        %v288 = vsub.s32 %v285, %v287
        %v289 = vrot.slane %v282, %v288
        %v291 = vlaneseq
        %vm292 = vcmp.ge.s32.totalorder %v291, 0
        %vm293 = vcmp.lt.s32.totalorder %v291, 256
        %vm294 = vmand %vm292, %vm293
        %295 = vst.msk [vmem:[%s197] sm:$0x3] %vm294, %v289
        %s296 = sand.u32 %s82, 1
        %s297 = scalar_lea.sflag [#allocation4], %s296
        %s298 = sand.u32 %s82, 1
        %s299 = smul.addr %s298, 2
        %s300 = scalar_lea.vmem [#allocation7], %s299
        // Predicated region
        $region37: #{tpu_custom_call.1} parent=27 // pred_check
          %p301 = pneg %p92
        $region38: #{tpu_custom_call.1} parent=27 // pred_check_branch
          %303 = sbr.rel (%p301) target = $region40
        $region39: #{tpu_custom_call.1} parent=27 // pred_region
          %s305 = ssub.s32 32, 32
          %306 = vsyncadd %s297, %s305
          %s307 = smul.addr %s22, 2
          %s308 = smul.addr %s307, 16
          %s309 = scalar_lea.hbm %s2, %s308
          %s311 = sshll.u32 %s300, 4
          %s312 = int_to_ptr.vmem [resolvable:$true] %s311
          %314 = dma.vmem_to_hbm [thread:$0]  %s312, 32, %s309, %s297
        $region40: #{tpu_custom_call.1} parent=27 // pred_fallthru
          _
      $region28: #{tpu_custom_call.1} parent=5 // pred_fallthru
        _
      %p315 = scmp.le.s32.totalorder 2, %s17
      // Predicated region
      $region41: #{tpu_custom_call.1} parent=5 // pred_check
        %p316 = pneg %p315
      $region42: #{tpu_custom_call.1} parent=5 // pred_check_branch
        %318 = sbr.rel (%p316) target = $region44
      $region43: #{tpu_custom_call.1} parent=5 // pred_region
        %s319 = ssub.s32 %s17, 2
        // Predicated region
        $region45: #{tpu_custom_call.1} parent=43 // pred_check
          %p320 = pneg %p98
        $region46: #{tpu_custom_call.1} parent=43 // pred_check_branch
          %322 = sbr.rel (%p320) target = $region48
        $region47: #{tpu_custom_call.1} parent=43 // pred_region
          %s323 = sand.u32 %s83, 1
          %s324 = scalar_lea.sflag [#allocation4], %s323
          %s325 = sand.u32 %s83, 1
          %s326 = smul.addr %s325, 2
          %s327 = scalar_lea.vmem [#allocation7], %s326
          %328 = dma.done %s324, 32
        $region48: #{tpu_custom_call.1} parent=43 // pred_fallthru
          _
      $region44: #{tpu_custom_call.1} parent=5 // pred_fallthru
        _
    $region6: #{tpu_custom_call.1} parent=1 // loop_footer
      %s21 = sadd.s32 1, %s17
    $region7: #{tpu_custom_call.1} parent=1 // loop_footer_branch
      %16 = sbr.rel target = $region3
    $region8: #{tpu_custom_call.1} parent=1 // loop_exit
      _
    %329 = vsyncpa [#allocation3], 1
    %s330 = scalar_lea.sflag [#allocation3], 1
    %331 = vsyncpa %s330, 1
    %332 = vsyncpa [#allocation6], 1
    %s333 = scalar_lea.sflag [#allocation6], 1
    %334 = vsyncpa %s333, 1
    %335 = vsyncpa [#allocation4], 1
    %s336 = scalar_lea.sflag [#allocation4], 1
    %337 = vsyncpa %s336, 1

</llo_original>
